<compile_context>
chip_gen: v7x
topology: tpu7x:2x2x1
jax: 0.10.0
libtpu: 0.0.40
codegen_flags: <defaults>
</compile_context>

<pallas_src>
import jax
import jax.numpy as jnp
from jax.experimental import pallas as pl
from jax.experimental.pallas import tpu as pltpu


def _scale_kernel(s_ref, a_ref, o_ref):
    # s_ref: (1,) scalar in SMEM; a_ref / o_ref: VMEM tiles.
    o_ref[...] = a_ref[...] * s_ref[0]


def _round_up(x: int, m: int) -> int:
    return ((x + m - 1) // m) * m


def _sublane(dtype) -> int:
    # Native sublane multiple per dtype: 8 for 4-byte, 16 for 2-byte, 32 for 1-byte.
    isz = int(jnp.dtype(dtype).itemsize)
    return max(8, 32 // max(isz, 1))


def _best_lane_width(total_elems: int, cap: int = 65536) -> int:
    # Largest multiple of 128 that divides total_elems (bounded search, trace time only).
    best = 0
    lane = 128
    limit = min(total_elems, cap)
    while lane <= limit:
        if total_elems % lane == 0:
            best = lane
        lane += 128
    return best


def _tpu_params():
    """(target_tile_bytes, vmem_limit_bytes, tiny_bytes, num_cores) for the current chip."""
    vmem_cap = 64 * 1024 * 1024   # conservative default (v7x)
    num_cores = 1
    try:
        info = pltpu.get_tpu_info()
        cap = getattr(info, "vmem_capacity_bytes", None)
        if isinstance(cap, int) and cap > 0:
            vmem_cap = cap
        for attr in ("num_cores", "core_count", "tensorcore_count", "num_tensorcores"):
            v = getattr(info, attr, None)
            if isinstance(v, int) and v > 0:
                num_cores = v
                break
    except Exception:
        pass
    target_tile = min(max(vmem_cap // 8, 4 * 1024 * 1024), 8 * 1024 * 1024)
    vmem_limit = min((vmem_cap * 3) // 4, 48 * 1024 * 1024)
    tiny_bytes = (512 * 1024) if num_cores > 1 else (2 * 1024 * 1024)
    return target_tile, vmem_limit, tiny_bytes, num_cores


def _pallas_scale_2d(a, s_arr, target_tile, vmem_limit, tiny_bytes, num_cores):
    M, N = a.shape
    itemsize = int(jnp.dtype(a.dtype).itemsize)
    total_bytes = M * N * itemsize
    sub = _sublane(a.dtype)

    # ---- Tiny inputs: whole array as one block, one grid step. --------------
    if total_bytes <= tiny_bytes:
        return pl.pallas_call(
            _scale_kernel,
            out_shape=jax.ShapeDtypeStruct((M, N), a.dtype),
            grid=(1,),
            in_specs=[
                pl.BlockSpec(memory_space=pltpu.SMEM),
                pl.BlockSpec((M, N), lambda i: (0, 0)),
            ],
            out_specs=pl.BlockSpec((M, N), lambda i: (0, 0)),
            compiler_params=pltpu.CompilerParams(
                dimension_semantics=("parallel",),
                vmem_limit_bytes=vmem_limit,
            ),
        )(s_arr, a)

    row_bytes = N * itemsize

    # ---- Preferred path: full-width row slabs (tm, N), 1-D grid over M. -----
    if row_bytes * sub <= target_tile:
        tm = max(sub, (target_tile // row_bytes) // sub * sub)
        tm = min(tm, _round_up(M, sub))
        steps = pl.cdiv(M, tm)
        if num_cores > 1:
            # Megacore: aim for an even step count >= 2*cores so each core gets
            # work and can double-buffer.
            min_steps = 2 * num_cores
            if steps < min_steps and M > sub * min_steps:
                tm = max(sub, _round_up(pl.cdiv(M, min_steps), sub))
                steps = pl.cdiv(M, tm)
            if steps > 1 and steps % 2 == 1:
                tm2 = max(sub, _round_up(pl.cdiv(M, steps + 1), sub))
                if pl.cdiv(M, tm2) % 2 == 0:
                    tm = tm2
                    steps = pl.cdiv(M, tm)
        return pl.pallas_call(
            _scale_kernel,
            out_shape=jax.ShapeDtypeStruct((M, N), a.dtype),
            grid=(steps,),
            in_specs=[
                pl.BlockSpec(memory_space=pltpu.SMEM),
                pl.BlockSpec((tm, N), lambda i: (i, 0)),
            ],
            out_specs=pl.BlockSpec((tm, N), lambda i: (i, 0)),
            compiler_params=pltpu.CompilerParams(
                dimension_semantics=("parallel",),
                vmem_limit_bytes=vmem_limit,
            ),
        )(s_arr, a)

    # ---- Very wide N: 2-D tiling with a lane-dense tn, balanced across N. ---
    tn_cap = max(512, (target_tile // (sub * itemsize)) // 128 * 128)
    n_blocks = max(1, pl.cdiv(N, tn_cap))
    tn = min(_round_up(N, 128), _round_up(pl.cdiv(N, n_blocks), 128))
    tm = max(sub, (target_tile // (tn * itemsize)) // sub * sub)
    tm = min(tm, _round_up(M, sub))
    grid = (pl.cdiv(M, tm), pl.cdiv(N, tn))
    return pl.pallas_call(
        _scale_kernel,
        out_shape=jax.ShapeDtypeStruct((M, N), a.dtype),
        grid=grid,
        in_specs=[
            pl.BlockSpec(memory_space=pltpu.SMEM),
            pl.BlockSpec((tm, tn), lambda i, j: (i, j)),
        ],
        out_specs=pl.BlockSpec((tm, tn), lambda i, j: (i, j)),
        compiler_params=pltpu.CompilerParams(
            dimension_semantics=("parallel", "parallel"),
            vmem_limit_bytes=vmem_limit,
        ),
    )(s_arr, a)


def matrix_scalar_mul(a: jax.Array, s: float) -> jax.Array:
    """C = A * s for a 2-D matrix A."""
    M, N = a.shape
    # s is cast to a.dtype before the multiply (matches torch's float-tensor * python-float).
    # TODO(synk): PyTorch type-promotes integer tensors multiplied by a float scalar; this cast does not.
    s_arr = jnp.asarray(s, dtype=a.dtype).reshape(1)
    target_tile, vmem_limit, tiny_bytes, num_cores = _tpu_params()

    a2 = a
    reshaped = False
    # Lane-dense fallback for narrow / unaligned N (elementwise op is layout-invariant).
    if N % 128 != 0:
        lane_w = _best_lane_width(M * N)
        if lane_w >= 128:
            a2 = a.reshape((M * N) // lane_w, lane_w)
            reshaped = True

    out = _pallas_scale_2d(a2, s_arr, target_tile, vmem_limit, tiny_bytes, num_cores)
    if reshaped:
        out = out.reshape(M, N)
    return out


if __name__ == "__main__":
    key = jax.random.PRNGKey(0)
    s = 3.14159

    # Small shape consistent with the module's (M, N) input -> single-block path.
    M, N = 256, 256
    A = jax.random.normal(key, (M, N), dtype=jnp.float32)
    C = matrix_scalar_mul(A, s)
    jax.block_until_ready(C)
    assert jnp.allclose(C, A * jnp.float32(s), rtol=1e-6, atol=1e-6), "mismatch (tiny path)"

    k1, k2, k3, k4 = jax.random.split(key, 4)

    # Larger shape -> row-slab pipelined path.
    A2 = jax.random.normal(k1, (2048, 1024), dtype=jnp.float32)
    C2 = matrix_scalar_mul(A2, s)
    jax.block_until_ready(C2)
    assert jnp.allclose(C2, A2 * jnp.float32(s), rtol=1e-6, atol=1e-6), "mismatch (row-slab path)"

    # Narrow N (not a multiple of 128) -> lane-dense reshape path.
    A3 = jax.random.normal(k2, (4096, 32), dtype=jnp.float32)
    C3 = matrix_scalar_mul(A3, s)
    jax.block_until_ready(C3)
    assert jnp.allclose(C3, A3 * jnp.float32(s), rtol=1e-6, atol=1e-6), "mismatch (lane-dense path)"

    # Ragged shape (M not mult of 8, N not mult of 128, no clean 128-divisor) -> padded row-slab blocks.
    A4 = jax.random.normal(k3, (1000, 3000), dtype=jnp.float32)
    C4 = matrix_scalar_mul(A4, s)
    jax.block_until_ready(C4)
    assert jnp.allclose(C4, A4 * jnp.float32(s), rtol=1e-6, atol=1e-6), "mismatch (ragged path)"

    # bf16 input -> dtype-aware sublane rounding.
    A5 = jax.random.normal(k4, (512, 512), dtype=jnp.bfloat16)
    C5 = matrix_scalar_mul(A5, s)
    jax.block_until_ready(C5)
    ref5 = A5 * jnp.asarray(s, dtype=jnp.bfloat16)
    assert jnp.allclose(C5.astype(jnp.float32), ref5.astype(jnp.float32),
                        rtol=2e-2, atol=2e-2), "mismatch (bf16 path)"

    print("KERNEL_OK")
</pallas_src>

<mosaic_0001>
module attributes {stable_mosaic.version = 11 : i64} {
  func.func @_scale_kernel(%arg0: i32, %arg1: memref<1xf32, #tpu.memory_space<smem>>, %arg2: memref<256x256xf32, #tpu.memory_space<vmem>>, %arg3: memref<256x256xf32, #tpu.memory_space<vmem>>) attributes {dimension_semantics = [#tpu.dimension_semantics<parallel>], iteration_bounds = array<i64: 1>, scalar_prefetch = 0 : i64, scratch_operands = 0 : i64, tpu.core_type = #tpu.core_type<tc>, window_params = [{transform_indices = @transform_0, window_bounds = array<i64: 1>}, {pipeline_mode = #tpu.pipeline_mode<synchronous>, transform_indices = @transform_1, window_bounds = array<i64: 256, 256>}, {pipeline_mode = #tpu.pipeline_mode<synchronous>, transform_indices = @transform_2, window_bounds = array<i64: 256, 256>}]} {
    %c0 = arith.constant 0 : index
    %c0_0 = arith.constant 0 : index
    %0 = vector.load %arg2[%c0, %c0_0] : memref<256x256xf32, #tpu.memory_space<vmem>>, vector<256x256xf32>
    %c0_1 = arith.constant 0 : index
    %1 = memref.load %arg1[%c0_1] : memref<1xf32, #tpu.memory_space<smem>>
    %2 = vector.broadcast %1 : f32 to vector<256x256xf32>
    %3 = arith.mulf %0, %2 : vector<256x256xf32>
    %c0_2 = arith.constant 0 : index
    %c0_3 = arith.constant 0 : index
    %4 = vector.load %arg3[%c0_2, %c0_3] : memref<256x256xf32, #tpu.memory_space<vmem>>, vector<256x256xf32>
    tpu.vector_store %arg3[%c0_2, %c0_3], %3 {strides = array<i32>} : memref<256x256xf32, #tpu.memory_space<vmem>>, vector<256x256xf32>,
    return
  }
  func.func @transform_0(%arg0: i32) -> i32 {
    %c0_i32 = arith.constant 0 : i32
    %c0_i32_0 = arith.constant 0 : i32
    return %c0_i32 : i32
  }
  func.func @transform_1(%arg0: i32) -> (i32, i32) {
    %c0_i32 = arith.constant 0 : i32
    %c0_i32_0 = arith.constant 0 : i32
    %c0_i32_1 = arith.constant 0 : i32
    return %c0_i32, %c0_i32_0 : i32, i32
  }
  func.func @transform_2(%arg0: i32) -> (i32, i32) {
    %c0_i32 = arith.constant 0 : i32
    %c0_i32_0 = arith.constant 0 : i32
    %c0_i32_1 = arith.constant 0 : i32
    return %c0_i32, %c0_i32_0 : i32, i32
  }
}

</mosaic_0001>

<llo_original>
// kernel: tpu_custom_call.1
$region0: #{tpu_custom_call.1}
  #allocation0 [shape = 'u32[]', space=smem, size = 0x4, offset = 0x4, fixed_abs, tag = 'smem constant byte address 0x4 - core index']
  #allocation1 [shape = 'u32[144,128]{1,0:T(1,128)}', space=vmem, size = 0x12000, scoped, tag = 'internal scratch']
  #allocation2 [shape = 'f32[1]{0:T(128)S(6)}', space=smem, size = 0x200, scoped, tag = 'scoped memory for tpu_custom_call.1']
  %s0 = inlined_call_operand.<no memory space> [shape: f32[1], index: 0, kind: input, shape index: {}]
  %s1 = inlined_call_operand.hbm [shape: f32[256,256], index: 1, kind: input, shape index: {}]
  %s2 = inlined_call_operand.hbm [shape: f32[256,256], index: 2, kind: output, shape index: {}]
  %s3 = sld [smem:[#allocation0]]
  $region22: #{tpu_custom_call.1} parent=0
    _
  %s5 = ssub.s32 1, %s3
  %s6 = scalar_select 0, %s5, %s3
  %7 = sst [smem:[#allocation2]] %s0
  $region1: #{tpu_custom_call.1} parent=0
    #allocation3 [shape = 'u8[262144]{0}', space=vmem, size = 0x40000, scoped, tag = 'input window, operand 1, single buffered']
    #allocation4 [shape = 's32[1]{0}', space=sflag, size = 0x4, scoped, tag = 'scoped memory for tpu_custom_call.1']
    #allocation5 [shape = 's32[1]{0}', space=sflag, size = 0x4, scoped, tag = 'scoped memory for tpu_custom_call.1']
    #allocation6 [shape = 'u8[262144]{0}', space=vmem, size = 0x40000, scoped, tag = 'output window, operand 0, single buffered']
    %8 = vsyncpa [#allocation4], 0
    %9 = vsyncpa [#allocation5], 0
    // Predicated region
    $region2: #{tpu_custom_call.1} parent=1 // pred_check
      _
    $region3: #{tpu_custom_call.1} parent=1 // pred_check_branch
      %11 = sbr.rel (0) target = $region5
    $region4: #{tpu_custom_call.1} parent=1 // pred_region
      _
    $region5: #{tpu_custom_call.1} parent=1 // pred_fallthru
      _
    // Predicated region
    $region6: #{tpu_custom_call.1} parent=1 // pred_check
      _
    $region7: #{tpu_custom_call.1} parent=1 // pred_check_branch
      %13 = sbr.rel (0) target = $region9
    $region8: #{tpu_custom_call.1} parent=1 // pred_region
      %s15 = ssub.s32 8192, 8192
      %16 = vsyncadd [#allocation4], %s15
      %s17 = sshll.u32 [#allocation3], 4
      %s18 = int_to_ptr.vmem [resolvable:$true] %s17
      %23 = dma.hbm_to_vmem [thread:$0]  %s1, 8192, %s18, [#allocation4], 256, 256, 16
    $region9: #{tpu_custom_call.1} parent=1 // pred_fallthru
      _
    // Predicated region
    $region10: #{tpu_custom_call.1} parent=1 // pred_check
      _
    $region11: #{tpu_custom_call.1} parent=1 // pred_check_branch
      %25 = sbr.rel (0) target = $region13
    $region12: #{tpu_custom_call.1} parent=1 // pred_region
      %26 = dma.done [#allocation4], 8192
    $region13: #{tpu_custom_call.1} parent=1 // pred_fallthru
      _
    %v27 = vld [vmem:[#allocation3] sm:$0xff]
    %v28 = vld [vmem:[#allocation3 + $0x8] sm:$0xff]
    %v29 = vld [vmem:[#allocation3 + $0x10] sm:$0xff]
    %v30 = vld [vmem:[#allocation3 + $0x18] sm:$0xff]
    %v31 = vld [vmem:[#allocation3 + $0x20] sm:$0xff]
    %v32 = vld [vmem:[#allocation3 + $0x28] sm:$0xff]
    %v33 = vld [vmem:[#allocation3 + $0x30] sm:$0xff]
    %v34 = vld [vmem:[#allocation3 + $0x38] sm:$0xff]
    %v35 = vld [vmem:[#allocation3 + $0x40] sm:$0xff]
    %v36 = vld [vmem:[#allocation3 + $0x48] sm:$0xff]
    %v37 = vld [vmem:[#allocation3 + $0x50] sm:$0xff]
    %v38 = vld [vmem:[#allocation3 + $0x58] sm:$0xff]
    %v39 = vld [vmem:[#allocation3 + $0x60] sm:$0xff]
    %v40 = vld [vmem:[#allocation3 + $0x68] sm:$0xff]
    %v41 = vld [vmem:[#allocation3 + $0x70] sm:$0xff]
    %v42 = vld [vmem:[#allocation3 + $0x78] sm:$0xff]
    %v43 = vld [vmem:[#allocation3 + $0x80] sm:$0xff]
    %v44 = vld [vmem:[#allocation3 + $0x88] sm:$0xff]
    %v45 = vld [vmem:[#allocation3 + $0x90] sm:$0xff]
    %v46 = vld [vmem:[#allocation3 + $0x98] sm:$0xff]
    %v47 = vld [vmem:[#allocation3 + $0xa0] sm:$0xff]
    %v48 = vld [vmem:[#allocation3 + $0xa8] sm:$0xff]
    %v49 = vld [vmem:[#allocation3 + $0xb0] sm:$0xff]
    %v50 = vld [vmem:[#allocation3 + $0xb8] sm:$0xff]
    %v51 = vld [vmem:[#allocation3 + $0xc0] sm:$0xff]
    %v52 = vld [vmem:[#allocation3 + $0xc8] sm:$0xff]
    %v53 = vld [vmem:[#allocation3 + $0xd0] sm:$0xff]
    %v54 = vld [vmem:[#allocation3 + $0xd8] sm:$0xff]
    %v55 = vld [vmem:[#allocation3 + $0xe0] sm:$0xff]
    %v56 = vld [vmem:[#allocation3 + $0xe8] sm:$0xff]
    %v57 = vld [vmem:[#allocation3 + $0xf0] sm:$0xff]
    %v58 = vld [vmem:[#allocation3 + $0xf8] sm:$0xff]
    %v59 = vld [vmem:[#allocation3 + $0x100] sm:$0xff]
    %v60 = vld [vmem:[#allocation3 + $0x108] sm:$0xff]
    %v61 = vld [vmem:[#allocation3 + $0x110] sm:$0xff]
    %v62 = vld [vmem:[#allocation3 + $0x118] sm:$0xff]
    %v63 = vld [vmem:[#allocation3 + $0x120] sm:$0xff]
    %v64 = vld [vmem:[#allocation3 + $0x128] sm:$0xff]
    %v65 = vld [vmem:[#allocation3 + $0x130] sm:$0xff]
    %v66 = vld [vmem:[#allocation3 + $0x138] sm:$0xff]
    %v67 = vld [vmem:[#allocation3 + $0x140] sm:$0xff]
    %v68 = vld [vmem:[#allocation3 + $0x148] sm:$0xff]
    %v69 = vld [vmem:[#allocation3 + $0x150] sm:$0xff]
    %v70 = vld [vmem:[#allocation3 + $0x158] sm:$0xff]
    %v71 = vld [vmem:[#allocation3 + $0x160] sm:$0xff]
    %v72 = vld [vmem:[#allocation3 + $0x168] sm:$0xff]
    %v73 = vld [vmem:[#allocation3 + $0x170] sm:$0xff]
    %v74 = vld [vmem:[#allocation3 + $0x178] sm:$0xff]
    %v75 = vld [vmem:[#allocation3 + $0x180] sm:$0xff]
    %v76 = vld [vmem:[#allocation3 + $0x188] sm:$0xff]
    %v77 = vld [vmem:[#allocation3 + $0x190] sm:$0xff]
    %v78 = vld [vmem:[#allocation3 + $0x198] sm:$0xff]
    %v79 = vld [vmem:[#allocation3 + $0x1a0] sm:$0xff]
    %v80 = vld [vmem:[#allocation3 + $0x1a8] sm:$0xff]
    %v81 = vld [vmem:[#allocation3 + $0x1b0] sm:$0xff]
    %v82 = vld [vmem:[#allocation3 + $0x1b8] sm:$0xff]
    %v83 = vld [vmem:[#allocation3 + $0x1c0] sm:$0xff]
    %v84 = vld [vmem:[#allocation3 + $0x1c8] sm:$0xff]
    %v85 = vld [vmem:[#allocation3 + $0x1d0] sm:$0xff]
    %v86 = vld [vmem:[#allocation3 + $0x1d8] sm:$0xff]
    %v87 = vld [vmem:[#allocation3 + $0x1e0] sm:$0xff]
    %v88 = vld [vmem:[#allocation3 + $0x1e8] sm:$0xff]
    %v89 = vld [vmem:[#allocation3 + $0x1f0] sm:$0xff]
    %v90 = vld [vmem:[#allocation3 + $0x1f8] sm:$0xff]
    %s91 = sld [smem:[#allocation2]]
    %v92 = vstv %s91
    %v93 = vmul.f32 %v27, %v92
    %v94 = vmul.f32 %v28, %v92
    %v95 = vmul.f32 %v29, %v92
    %v96 = vmul.f32 %v30, %v92
    %v97 = vmul.f32 %v31, %v92
    %v98 = vmul.f32 %v32, %v92
    %v99 = vmul.f32 %v33, %v92
    %v100 = vmul.f32 %v34, %v92
    %v101 = vmul.f32 %v35, %v92
    %v102 = vmul.f32 %v36, %v92
    %v103 = vmul.f32 %v37, %v92
    %v104 = vmul.f32 %v38, %v92
    %v105 = vmul.f32 %v39, %v92
    %v106 = vmul.f32 %v40, %v92
    %v107 = vmul.f32 %v41, %v92
    %v108 = vmul.f32 %v42, %v92
    %v109 = vmul.f32 %v43, %v92
    %v110 = vmul.f32 %v44, %v92
    %v111 = vmul.f32 %v45, %v92
    %v112 = vmul.f32 %v46, %v92
    %v113 = vmul.f32 %v47, %v92
    %v114 = vmul.f32 %v48, %v92
    %v115 = vmul.f32 %v49, %v92
    %v116 = vmul.f32 %v50, %v92
    %v117 = vmul.f32 %v51, %v92
    %v118 = vmul.f32 %v52, %v92
    %v119 = vmul.f32 %v53, %v92
    %v120 = vmul.f32 %v54, %v92
    %v121 = vmul.f32 %v55, %v92
    %v122 = vmul.f32 %v56, %v92
    %v123 = vmul.f32 %v57, %v92
    %v124 = vmul.f32 %v58, %v92
    %v125 = vmul.f32 %v59, %v92
    %v126 = vmul.f32 %v60, %v92
    %v127 = vmul.f32 %v61, %v92
    %v128 = vmul.f32 %v62, %v92
    %v129 = vmul.f32 %v63, %v92
    %v130 = vmul.f32 %v64, %v92
    %v131 = vmul.f32 %v65, %v92
    %v132 = vmul.f32 %v66, %v92
    %v133 = vmul.f32 %v67, %v92
    %v134 = vmul.f32 %v68, %v92
    %v135 = vmul.f32 %v69, %v92
    %v136 = vmul.f32 %v70, %v92
    %v137 = vmul.f32 %v71, %v92
    %v138 = vmul.f32 %v72, %v92
    %v139 = vmul.f32 %v73, %v92
    %v140 = vmul.f32 %v74, %v92
    %v141 = vmul.f32 %v75, %v92
    %v142 = vmul.f32 %v76, %v92
    %v143 = vmul.f32 %v77, %v92
    %v144 = vmul.f32 %v78, %v92
    %v145 = vmul.f32 %v79, %v92
    %v146 = vmul.f32 %v80, %v92
    %v147 = vmul.f32 %v81, %v92
    %v148 = vmul.f32 %v82, %v92
    %v149 = vmul.f32 %v83, %v92
    %v150 = vmul.f32 %v84, %v92
    %v151 = vmul.f32 %v85, %v92
    %v152 = vmul.f32 %v86, %v92
    %v153 = vmul.f32 %v87, %v92
    %v154 = vmul.f32 %v88, %v92
    %v155 = vmul.f32 %v89, %v92
    %v156 = vmul.f32 %v90, %v92
    %157 = vst [vmem:[#allocation6] sm:$0xff] %v93
    %158 = vst [vmem:[#allocation6 + $0x8] sm:$0xff] %v94
    %159 = vst [vmem:[#allocation6 + $0x10] sm:$0xff] %v95
    %160 = vst [vmem:[#allocation6 + $0x18] sm:$0xff] %v96
    %161 = vst [vmem:[#allocation6 + $0x20] sm:$0xff] %v97
    %162 = vst [vmem:[#allocation6 + $0x28] sm:$0xff] %v98
    %163 = vst [vmem:[#allocation6 + $0x30] sm:$0xff] %v99
    %164 = vst [vmem:[#allocation6 + $0x38] sm:$0xff] %v100
    %165 = vst [vmem:[#allocation6 + $0x40] sm:$0xff] %v101
    %166 = vst [vmem:[#allocation6 + $0x48] sm:$0xff] %v102
    %167 = vst [vmem:[#allocation6 + $0x50] sm:$0xff] %v103
    %168 = vst [vmem:[#allocation6 + $0x58] sm:$0xff] %v104
    %169 = vst [vmem:[#allocation6 + $0x60] sm:$0xff] %v105
    %170 = vst [vmem:[#allocation6 + $0x68] sm:$0xff] %v106
    %171 = vst [vmem:[#allocation6 + $0x70] sm:$0xff] %v107
    %172 = vst [vmem:[#allocation6 + $0x78] sm:$0xff] %v108
    %173 = vst [vmem:[#allocation6 + $0x80] sm:$0xff] %v109
    %174 = vst [vmem:[#allocation6 + $0x88] sm:$0xff] %v110
    %175 = vst [vmem:[#allocation6 + $0x90] sm:$0xff] %v111
    %176 = vst [vmem:[#allocation6 + $0x98] sm:$0xff] %v112
    %177 = vst [vmem:[#allocation6 + $0xa0] sm:$0xff] %v113
    %178 = vst [vmem:[#allocation6 + $0xa8] sm:$0xff] %v114
    %179 = vst [vmem:[#allocation6 + $0xb0] sm:$0xff] %v115
    %180 = vst [vmem:[#allocation6 + $0xb8] sm:$0xff] %v116
    %181 = vst [vmem:[#allocation6 + $0xc0] sm:$0xff] %v117
    %182 = vst [vmem:[#allocation6 + $0xc8] sm:$0xff] %v118
    %183 = vst [vmem:[#allocation6 + $0xd0] sm:$0xff] %v119
    %184 = vst [vmem:[#allocation6 + $0xd8] sm:$0xff] %v120
    %185 = vst [vmem:[#allocation6 + $0xe0] sm:$0xff] %v121
    %186 = vst [vmem:[#allocation6 + $0xe8] sm:$0xff] %v122
    %187 = vst [vmem:[#allocation6 + $0xf0] sm:$0xff] %v123
    %188 = vst [vmem:[#allocation6 + $0xf8] sm:$0xff] %v124
    %189 = vst [vmem:[#allocation6 + $0x100] sm:$0xff] %v125
    %190 = vst [vmem:[#allocation6 + $0x108] sm:$0xff] %v126
    %191 = vst [vmem:[#allocation6 + $0x110] sm:$0xff] %v127
    %192 = vst [vmem:[#allocation6 + $0x118] sm:$0xff] %v128
    %193 = vst [vmem:[#allocation6 + $0x120] sm:$0xff] %v129
    %194 = vst [vmem:[#allocation6 + $0x128] sm:$0xff] %v130
    %195 = vst [vmem:[#allocation6 + $0x130] sm:$0xff] %v131
    %196 = vst [vmem:[#allocation6 + $0x138] sm:$0xff] %v132
    %197 = vst [vmem:[#allocation6 + $0x140] sm:$0xff] %v133
    %198 = vst [vmem:[#allocation6 + $0x148] sm:$0xff] %v134
    %199 = vst [vmem:[#allocation6 + $0x150] sm:$0xff] %v135
    %200 = vst [vmem:[#allocation6 + $0x158] sm:$0xff] %v136
    %201 = vst [vmem:[#allocation6 + $0x160] sm:$0xff] %v137
    %202 = vst [vmem:[#allocation6 + $0x168] sm:$0xff] %v138
    %203 = vst [vmem:[#allocation6 + $0x170] sm:$0xff] %v139
    %204 = vst [vmem:[#allocation6 + $0x178] sm:$0xff] %v140
    %205 = vst [vmem:[#allocation6 + $0x180] sm:$0xff] %v141
    %206 = vst [vmem:[#allocation6 + $0x188] sm:$0xff] %v142
    %207 = vst [vmem:[#allocation6 + $0x190] sm:$0xff] %v143
    %208 = vst [vmem:[#allocation6 + $0x198] sm:$0xff] %v144
    %209 = vst [vmem:[#allocation6 + $0x1a0] sm:$0xff] %v145
    %210 = vst [vmem:[#allocation6 + $0x1a8] sm:$0xff] %v146
    %211 = vst [vmem:[#allocation6 + $0x1b0] sm:$0xff] %v147
    %212 = vst [vmem:[#allocation6 + $0x1b8] sm:$0xff] %v148
    %213 = vst [vmem:[#allocation6 + $0x1c0] sm:$0xff] %v149
    %214 = vst [vmem:[#allocation6 + $0x1c8] sm:$0xff] %v150
    %215 = vst [vmem:[#allocation6 + $0x1d0] sm:$0xff] %v151
    %216 = vst [vmem:[#allocation6 + $0x1d8] sm:$0xff] %v152
    %217 = vst [vmem:[#allocation6 + $0x1e0] sm:$0xff] %v153
    %218 = vst [vmem:[#allocation6 + $0x1e8] sm:$0xff] %v154
    %219 = vst [vmem:[#allocation6 + $0x1f0] sm:$0xff] %v155
    %220 = vst [vmem:[#allocation6 + $0x1f8] sm:$0xff] %v156
    // Predicated region
    $region14: #{tpu_custom_call.1} parent=1 // pred_check
      _
    $region15: #{tpu_custom_call.1} parent=1 // pred_check_branch
      %222 = sbr.rel (0) target = $region17
    $region16: #{tpu_custom_call.1} parent=1 // pred_region
      %s224 = ssub.s32 8192, 8192
      %225 = vsyncadd [#allocation5], %s224
      %s226 = sshll.u32 [#allocation6], 4
      %s227 = int_to_ptr.vmem [resolvable:$true] %s226
      %232 = dma.vmem_to_hbm [thread:$0]  %s227, 8192, %s2, [#allocation5], 256, 256, 16
    $region17: #{tpu_custom_call.1} parent=1 // pred_fallthru
      _
    // Predicated region
    $region18: #{tpu_custom_call.1} parent=1 // pred_check
      _
    $region19: #{tpu_custom_call.1} parent=1 // pred_check_branch
      %234 = sbr.rel (0) target = $region21
    $region20: #{tpu_custom_call.1} parent=1 // pred_region
      %235 = dma.done [#allocation5], 8192
    $region21: #{tpu_custom_call.1} parent=1 // pred_fallthru
      _
    %236 = vsyncpa [#allocation4], 1
    %237 = vsyncpa [#allocation5], 1

</llo_original>
